<compile_context>
chip_gen: v7x
topology: tpu7x:2x2x1
jax: 0.10.0
libtpu: 0.0.40
codegen_flags: <defaults>
</compile_context>

<pallas_src>
import functools

import jax
import jax.numpy as jnp
from jax import lax
from jax.experimental import pallas as pl
from jax.experimental.pallas import tpu as pltpu

_LANES = 128
_SUBLANES = 8
_MAX_BLOCK_ROWS = 4096      # 4096 * 128 * 4 B = 2 MiB per f32 block (<= VMEM caps everywhere)
_NUM_SLICES = 2             # leading "parallel" axis -> 2 TensorCores on megacore chips


def _l1_partial_kernel(x_ref, o_ref, *, block_rows, blocks_per_slice,
                       total_rows, needs_mask):
    """Accumulate an (8,128) vector of partial |x| sums per slice."""
    s = pl.program_id(0)   # slice index (parallel)
    k = pl.program_id(1)   # block within slice (sequential reduction)

    @pl.when(k == 0)
    def _init():
        o_ref[...] = jnp.zeros_like(o_ref)

    x = jnp.abs(x_ref[...].astype(jnp.float32))          # (block_rows, 128)
    groups = block_rows // _SUBLANES

    def fold(v):
        # (block_rows,128) -> (groups,8,128) -> sum over groups: pure VPU adds
        return jnp.sum(v.reshape(groups, _SUBLANES, _LANES), axis=0)

    if needs_mask:
        row_start = (s * blocks_per_slice + k) * block_rows
        is_full = row_start + block_rows <= total_rows

        @pl.when(is_full)
        def _full():
            o_ref[...] += fold(x)

        @pl.when(jnp.logical_not(is_full))
        def _masked():
            row_ids = lax.broadcasted_iota(jnp.int32, x.shape, 0) + row_start
            o_ref[...] += fold(jnp.where(row_ids < total_rows, x, 0.0))
    else:
        o_ref[...] += fold(x)


def sparsity_forward(x):
    """JAX/Pallas equivalent of Sparsity.forward: torch.norm(x, 1) ** 2."""
    x = jnp.asarray(x)
    flat = x.reshape(-1)                      # native dtype: no extra HBM pass
    n = flat.shape[0]

    if n < _SUBLANES * _LANES:
        # Tiny input: a kernel launch is pure overhead.
        total = jnp.sum(jnp.abs(flat).astype(jnp.float32))
        return total * total

    rows = n // _LANES                        # >= 8
    n_kernel = rows * _LANES                  # bulk handled by the kernel

    block_rows = min(_MAX_BLOCK_ROWS, (rows // _SUBLANES) * _SUBLANES)
    num_blocks = -(-rows // block_rows)
    num_slices = min(_NUM_SLICES, num_blocks)
    blocks_per_slice = -(-num_blocks // num_slices)
    covered_blocks = num_slices * blocks_per_slice
    covered_rows = covered_blocks * block_rows
    needs_mask = covered_rows != rows         # partial last block or phantom blocks

    slab = (flat if n_kernel == n else flat[:n_kernel]).reshape(rows, _LANES)

    if covered_blocks > num_blocks:
        # Phantom blocks on the last slice: clamp to a valid block index
        # (their contribution is zeroed by the in-kernel row mask).
        def in_index_map(s, k):
            return (jnp.minimum(s * blocks_per_slice + k, num_blocks - 1), 0)
    else:
        def in_index_map(s, k):
            return (s * blocks_per_slice + k, 0)

    kernel = functools.partial(
        _l1_partial_kernel,
        block_rows=block_rows,
        blocks_per_slice=blocks_per_slice,
        total_rows=rows,
        needs_mask=needs_mask,
    )

    partials = pl.pallas_call(
        kernel,
        out_shape=jax.ShapeDtypeStruct((num_slices * _SUBLANES, _LANES),
                                       jnp.float32),
        grid_spec=pltpu.PrefetchScalarGridSpec(
            num_scalar_prefetch=0,
            grid=(num_slices, blocks_per_slice),
            in_specs=[pl.BlockSpec((block_rows, _LANES), in_index_map)],
            out_specs=pl.BlockSpec((_SUBLANES, _LANES), lambda s, k: (s, 0)),
        ),
        compiler_params=pltpu.CompilerParams(
            dimension_semantics=("parallel", "arbitrary"),
            vmem_limit_bytes=32 * 1024 * 1024,
        ),
        cost_estimate=pl.CostEstimate(
            flops=2 * n_kernel,
            transcendentals=0,
            bytes_accessed=n_kernel * flat.dtype.itemsize
            + num_slices * _SUBLANES * _LANES * 4,
        ),
    )(slab)

    l1 = jnp.sum(partials)                    # single final cross-lane reduce

    if n_kernel != n:                         # < 128-element lane tail
        l1 = l1 + jnp.sum(jnp.abs(flat[n_kernel:]).astype(jnp.float32))

    return l1 * l1                            # ||x||_1 ** 2


if __name__ == "__main__":
    key = jax.random.PRNGKey(0)

    # Primary check: NCHW input typical for this prior.
    x = jax.random.normal(key, (2, 4, 16, 16), dtype=jnp.float32)
    result = jax.block_until_ready(sparsity_forward(x))
    ref = jnp.sum(jnp.abs(x)) ** 2
    assert jnp.allclose(result, ref, rtol=1e-5, atol=1e-5), (result, ref)

    # Ragged shape: exercises the partial-last-block masking path + lane tail.
    k1, k2 = jax.random.split(key)
    x2 = jax.random.normal(k1, (3, 5, 17, 11), dtype=jnp.float32)
    r2 = jax.block_until_ready(sparsity_forward(x2))
    ref2 = jnp.sum(jnp.abs(x2)) ** 2
    assert jnp.allclose(r2, ref2, rtol=1e-5, atol=1e-5), (r2, ref2)

    # Larger input: exercises multi-block grid, 2-slice split and the clamped
    # phantom-block path (odd number of blocks).
    x3 = jax.random.normal(k2, (1, 2, 1024, 515), dtype=jnp.float32)
    r3 = jax.block_until_ready(sparsity_forward(x3))
    ref3 = jnp.sum(jnp.abs(x3)) ** 2
    assert jnp.allclose(r3, ref3, rtol=2e-4, atol=0.0), (r3, ref3)

    print("KERNEL_OK")
</pallas_src>

<mosaic_0001>
module attributes {stable_mosaic.version = 11 : i64} {
  func.func @_l1_partial_kernel(%arg0: i32, %arg1: i32, %arg2: memref<16x128xf32, #tpu.memory_space<vmem>>, %arg3: memref<8x128xf32, #tpu.memory_space<vmem>>) attributes {dimension_semantics = [#tpu.dimension_semantics<parallel>, #tpu.dimension_semantics<arbitrary>], iteration_bounds = array<i64: 1, 1>, scalar_prefetch = 0 : i64, scratch_operands = 0 : i64, tpu.core_type = #tpu.core_type<tc>, window_params = [{transform_indices = @transform_0, window_bounds = array<i64: 16, 128>}, {transform_indices = @transform_1, window_bounds = array<i64: 8, 128>}]} {
    %c0_i32 = arith.constant 0 : i32
    %0 = arith.cmpi eq, %arg1, %c0_i32 : i32
    %1 = arith.extui %0 : i1 to i32
    %c0_i32_0 = arith.constant 0 : i32
    %2 = arith.cmpi ne, %1, %c0_i32_0 : i32
    scf.if %2 {
      %cst_6 = arith.constant 0.000000e+00 : f32
      %10 = vector.broadcast %cst_6 : f32 to vector<8x128xf32>
      %c0_7 = arith.constant 0 : index
      %c0_8 = arith.constant 0 : index
      %11 = vector.load %arg3[%c0_7, %c0_8] : memref<8x128xf32, #tpu.memory_space<vmem>>, vector<8x128xf32>
      tpu.vector_store %arg3[%c0_7, %c0_8], %10 {strides = array<i32>} : memref<8x128xf32, #tpu.memory_space<vmem>>, vector<8x128xf32>,
    } else {
    }
    %c0 = arith.constant 0 : index
    %c0_1 = arith.constant 0 : index
    %3 = vector.load %arg2[%c0, %c0_1] : memref<16x128xf32, #tpu.memory_space<vmem>>, vector<16x128xf32>
    %4 = math.absf %3 : vector<16x128xf32>
    %c0_2 = arith.constant 0 : index
    %c0_3 = arith.constant 0 : index
    %5 = vector.load %arg3[%c0_2, %c0_3] : memref<8x128xf32, #tpu.memory_space<vmem>>, vector<8x128xf32>
    %6 = vector.shape_cast %4 : vector<16x128xf32> to vector<2x8x128xf32>
    %cst = arith.constant dense<0.000000e+00> : vector<8x128xf32>
    %7 = vector.multi_reduction <add>, %6, %cst [0] : vector<2x8x128xf32> to vector<8x128xf32>
    %8 = arith.addf %5, %7 : vector<8x128xf32>
    %c0_4 = arith.constant 0 : index
    %c0_5 = arith.constant 0 : index
    %9 = vector.load %arg3[%c0_4, %c0_5] : memref<8x128xf32, #tpu.memory_space<vmem>>, vector<8x128xf32>
    tpu.vector_store %arg3[%c0_4, %c0_5], %8 {strides = array<i32>} : memref<8x128xf32, #tpu.memory_space<vmem>>, vector<8x128xf32>,
    return
  }
  func.func @transform_0(%arg0: i32, %arg1: i32) -> (i32, i32) {
    %c1_i32 = arith.constant 1 : i32
    %0 = arith.muli %arg0, %c1_i32 : i32
    %1 = arith.addi %0, %arg1 : i32
    %c0_i32 = arith.constant 0 : i32
    %c0_i32_0 = arith.constant 0 : i32
    return %1, %c0_i32 : i32, i32
  }
  func.func @transform_1(%arg0: i32, %arg1: i32) -> (i32, i32) {
    %c0_i32 = arith.constant 0 : i32
    %c0_i32_0 = arith.constant 0 : i32
    return %arg0, %c0_i32 : i32, i32
  }
}

</mosaic_0001>

<llo_original>
// kernel: tpu_custom_call.1
$region0: #{tpu_custom_call.1}
  #allocation0 [shape = 'u32[]', space=smem, size = 0x4, offset = 0x4, fixed_abs, tag = 'smem constant byte address 0x4 - core index']
  #allocation1 [shape = 'u32[144,128]{1,0:T(1,128)}', space=vmem, size = 0x12000, scoped, tag = 'internal scratch']
  %s0 = inlined_call_operand.hbm [shape: f32[16,128], index: 0, kind: input, shape index: {}]
  %s1 = inlined_call_operand.hbm [shape: f32[8,128], index: 1, kind: output, shape index: {}]
  %s2 = sld [smem:[#allocation0]]
  $region22: #{tpu_custom_call.1} parent=0
    _
  %s4 = ssub.s32 1, %s2
  %s5 = scalar_select 0, %s4, %s2
  $region1: #{tpu_custom_call.1} parent=0
    #allocation2 [shape = 'u8[8192]{0}', space=vmem, size = 0x2000, scoped, tag = 'input window, operand 0, single buffered']
    #allocation3 [shape = 's32[1]{0}', space=sflag, size = 0x4, scoped, tag = 'scoped memory for tpu_custom_call.1']
    #allocation4 [shape = 's32[1]{0}', space=sflag, size = 0x4, scoped, tag = 'scoped memory for tpu_custom_call.1']
    #allocation5 [shape = 'u8[4096]{0}', space=vmem, size = 0x1000, scoped, tag = 'output window, operand 0, single buffered']
    %6 = vsyncpa [#allocation3], 0
    %7 = vsyncpa [#allocation4], 0
    // Predicated region
    $region2: #{tpu_custom_call.1} parent=1 // pred_check
      _
    $region3: #{tpu_custom_call.1} parent=1 // pred_check_branch
      %9 = sbr.rel (0) target = $region5
    $region4: #{tpu_custom_call.1} parent=1 // pred_region
      %s10 = sadd.s32 0, 0
      %s11 = smul.u32 2, %s10
      %s13 = ssub.s32 256, 256
      %14 = vsyncadd [#allocation3], %s13
      %s15 = smul.addr %s11, 128
      %s16 = scalar_lea.hbm %s0, %s15
      %s17 = sshll.u32 [#allocation2], 4
      %s18 = int_to_ptr.vmem [resolvable:$true] %s17
      %23 = dma.hbm_to_vmem [thread:$0]  %s16, 256, %s18, [#allocation3], 128, 128, 8
    $region5: #{tpu_custom_call.1} parent=1 // pred_fallthru
      _
    // Predicated region
    $region6: #{tpu_custom_call.1} parent=1 // pred_check
      _
    $region7: #{tpu_custom_call.1} parent=1 // pred_check_branch
      %25 = sbr.rel (0) target = $region9
    $region8: #{tpu_custom_call.1} parent=1 // pred_region
      %26 = dma.done [#allocation3], 256
    $region9: #{tpu_custom_call.1} parent=1 // pred_fallthru
      _
    %s27 = sadd.s32 0, 0
    %s28 = smul.u32 2, %s27
    %p29 = scmp.eq.s32.totalorder 0, 0
    // Predicated region
    $region10: #{tpu_custom_call.1} parent=1 // pred_check
      %p30 = pneg %p29
    $region11: #{tpu_custom_call.1} parent=1 // pred_check_branch
      %32 = sbr.rel (%p30) target = $region13
    $region12: #{tpu_custom_call.1} parent=1 // pred_region
      %33 = vst [vmem:[#allocation5] sm:$0xff] 0.0
    $region13: #{tpu_custom_call.1} parent=1 // pred_fallthru
      _
    %v34 = vld [vmem:[#allocation2] sm:$0xff]
    %v35 = vld [vmem:[#allocation2 + $0x8] sm:$0xff]
    %v36 = vand.u32 2147483647, %v34
    %v37 = vand.u32 2147483647, %v35
    %v38 = vld [vmem:[#allocation5] sm:$0xff]
    %v39 = vadd.f32 %v36, %v37
    %v40 = vadd.f32 %v38, %v39
    %41 = vst [vmem:[#allocation5] sm:$0xff] %v40
    // Predicated region
    $region14: #{tpu_custom_call.1} parent=1 // pred_check
      _
    $region15: #{tpu_custom_call.1} parent=1 // pred_check_branch
      %43 = sbr.rel (0) target = $region17
    $region16: #{tpu_custom_call.1} parent=1 // pred_region
      %s45 = ssub.s32 128, 128
      %46 = vsyncadd [#allocation4], %s45
      %s48 = sshll.u32 [#allocation5], 4
      %s49 = int_to_ptr.vmem [resolvable:$true] %s48
      %51 = dma.vmem_to_hbm [thread:$0]  %s49, 128, %s1, [#allocation4]
    $region17: #{tpu_custom_call.1} parent=1 // pred_fallthru
      _
    // Predicated region
    $region18: #{tpu_custom_call.1} parent=1 // pred_check
      _
    $region19: #{tpu_custom_call.1} parent=1 // pred_check_branch
      %53 = sbr.rel (0) target = $region21
    $region20: #{tpu_custom_call.1} parent=1 // pred_region
      %54 = dma.done [#allocation4], 128
    $region21: #{tpu_custom_call.1} parent=1 // pred_fallthru
      _
    %55 = vsyncpa [#allocation3], 1
    %56 = vsyncpa [#allocation4], 1

</llo_original>
